<compile_context>
chip_gen: v7x
topology: tpu7x:2x2x1
jax: 0.10.0
libtpu: 0.0.40
codegen_flags: <defaults>
</compile_context>

<pallas_src>
import jax
import jax.numpy as jnp
from jax.experimental import pallas as pl
from jax.experimental.pallas import tpu as pltpu


def _round_up(x: int, m: int) -> int:
    return (x + m - 1) // m * m


def _cdiv(a: int, b: int) -> int:
    return -(-a // b)


def _make_kernel(quantiles, n_valid: int, tile_rows: int):
    qs = [float(q) for q in quantiles]
    block_elems = tile_rows * 128

    def kernel(preds_ref, target_ref, out_ref, acc_ref):
        step = pl.program_id(1)

        @pl.when(step == 0)
        def _init():
            acc_ref[...] = jnp.zeros_like(acc_ref)

        target = target_ref[...].astype(jnp.float32)            # (tile_rows, 128)

        loss = jnp.zeros_like(target)
        for qi, q in enumerate(qs):                              # static unroll, Q tiny
            err = target - preds_ref[qi].astype(jnp.float32)     # (tile_rows, 128)
            loss = loss + jnp.maximum((q - 1.0) * err, q * err)  # pure VPU work
        # TODO(synk): if profiling shows VALU-bound on v7x, split into per-q error
        # accumulators + a shared relu accumulator and apply q weights at finalize
        # (5 -> 4 VPU ops/element).

        # Logical (unclamped) block index; the index_map clamps the DMA for the
        # duplicate tail blocks of the split axis, we mask their contribution here.
        blk = pl.program_id(0) * pl.num_programs(1) + step
        fully_valid = (blk + 1) * block_elems <= n_valid

        @pl.when(fully_valid)
        def _acc_full():
            acc_ref[...] = acc_ref[...] + loss

        @pl.when(jnp.logical_not(fully_valid))
        def _acc_masked():
            row = jax.lax.broadcasted_iota(jnp.int32, loss.shape, 0)
            lane = jax.lax.broadcasted_iota(jnp.int32, loss.shape, 1)
            gidx = blk * block_elems + row * 128 + lane
            acc_ref[...] = acc_ref[...] + jnp.where(gidx < n_valid, loss, 0.0)

        @pl.when(step == pl.num_programs(1) - 1)
        def _finalize():
            # One cross-sublane (XLU) reduction per core; lane-dense (1,128) output.
            out_ref[...] = jnp.sum(acc_ref[...], axis=0, keepdims=True)

    return kernel


def quantile_loss(preds, target, quantiles, *, tile_rows: int | None = None):
    """preds: (N, Q), target: (N,), quantiles: Q static Python floats -> scalar."""
    n, num_q = preds.shape
    assert target.shape == (n,)
    assert len(quantiles) == num_q

    # Reshape granularity: 8 sublanes x 128 lanes.
    n_pad = _round_up(n, 8 * 128)
    n_rows = n_pad // 128                       # multiple of 8

    if tile_rows is None:
        # ~4 MiB of HBM traffic per grid step (preds + target, f32-equivalent);
        # double-buffered VMEM stays well under the 16 MiB v5e default scoped limit.
        tile_rows = (4 * 1024 * 1024) // ((num_q + 1) * 128 * 4)
    tile_rows = max(8, min(tile_rows // 8 * 8, n_rows))

    num_blocks = _cdiv(n_rows, tile_rows)
    num_splits = 2 if num_blocks >= 2 else 1    # v7x: one half per TensorCore
    bpc = _cdiv(num_blocks, num_splits)

    # (N, Q) -> (Q, N): one strided pass over preds.
    # TODO(synk): emit predictions as (Q, N) upstream to skip this transpose.
    preds_t = preds.T
    target_v = target
    if n_pad != n:
        # Minimal pad only to the (8,128) reshape granularity; padded content is
        # irrelevant (the kernel masks by the true N).
        preds_t = jnp.pad(preds_t, ((0, 0), (0, n_pad - n)))
        target_v = jnp.pad(target_v, ((0, n_pad - n),))
    preds3 = preds_t.reshape(num_q, n_rows, 128)   # no-copy split of the minor axis
    target2 = target_v.reshape(n_rows, 128)

    def block_idx(c, i):
        # Clamp so duplicate tail blocks of the split axis re-read a valid block
        # (their contribution is masked to zero in-kernel via the logical index).
        return jnp.minimum(c * bpc + i, num_blocks - 1)

    kernel = _make_kernel(quantiles, n, tile_rows)

    cost = pl.CostEstimate(
        flops=5 * num_q * n,
        transcendentals=0,
        bytes_accessed=(preds.size * preds.dtype.itemsize
                        + target.size * target.dtype.itemsize
                        + num_splits * 128 * 4),
    )

    partials = pl.pallas_call(
        kernel,
        out_shape=jax.ShapeDtypeStruct((num_splits, 128), jnp.float32),
        grid=(num_splits, bpc),
        in_specs=[
            pl.BlockSpec((num_q, tile_rows, 128),
                         lambda c, i: (0, block_idx(c, i), 0)),
            pl.BlockSpec((tile_rows, 128),
                         lambda c, i: (block_idx(c, i), 0)),
        ],
        out_specs=pl.BlockSpec((1, 128), lambda c, i: (c, 0)),
        scratch_shapes=[pltpu.VMEM((tile_rows, 128), jnp.float32)],
        compiler_params=pltpu.CompilerParams(
            dimension_semantics=("parallel", "arbitrary"),
        ),
        cost_estimate=cost,
    )(preds3, target2)

    return jnp.sum(partials) / n


def _reference(preds, target, quantiles):
    q = jnp.asarray(quantiles, dtype=jnp.float32)[None, :]
    err = target[:, None].astype(jnp.float32) - preds.astype(jnp.float32)
    return jnp.mean(jnp.sum(jnp.maximum((q - 1.0) * err, q * err), axis=1))


if __name__ == "__main__":
    key = jax.random.PRNGKey(0)

    # Case 1: tiny batch, single block, ragged-tail masking.
    quantiles1 = [0.1, 0.5, 0.9]
    kp, kt, key = jax.random.split(key, 3)
    n1 = 8
    preds1 = jax.random.normal(kp, (n1, len(quantiles1)), dtype=jnp.float32)
    target1 = jax.random.normal(kt, (n1,), dtype=jnp.float32)
    out1 = jax.block_until_ready(quantile_loss(preds1, target1, quantiles1))
    ref1 = _reference(preds1, target1, quantiles1)
    assert jnp.allclose(out1, ref1, rtol=1e-5, atol=1e-5), (out1, ref1)

    # Case 2: non-aligned batch, Q=5, default tile sizing.
    quantiles2 = [0.05, 0.25, 0.5, 0.75, 0.95]
    kp2, kt2, key = jax.random.split(key, 3)
    n2 = 333
    preds2 = jax.random.normal(kp2, (n2, len(quantiles2)), dtype=jnp.float32)
    target2 = jax.random.normal(kt2, (n2,), dtype=jnp.float32)
    out2 = jax.block_until_ready(quantile_loss(preds2, target2, quantiles2))
    ref2 = _reference(preds2, target2, quantiles2)
    assert jnp.allclose(out2, ref2, rtol=1e-5, atol=1e-5), (out2, ref2)

    # Case 3: forces multiple blocks, the 2-way "parallel" split (with a clamped
    # duplicate tail block) and the masked ragged tail, still small.
    quantiles3 = [0.1, 0.5, 0.9]
    kp3, kt3, key = jax.random.split(key, 3)
    n3 = 2437
    preds3 = jax.random.normal(kp3, (n3, len(quantiles3)), dtype=jnp.float32)
    target3 = jax.random.normal(kt3, (n3,), dtype=jnp.float32)
    out3 = jax.block_until_ready(
        quantile_loss(preds3, target3, quantiles3, tile_rows=8))
    ref3 = _reference(preds3, target3, quantiles3)
    assert jnp.allclose(out3, ref3, rtol=1e-5, atol=1e-5), (out3, ref3)

    print("KERNEL_OK")
</pallas_src>

<mosaic_0001>
module attributes {stable_mosaic.version = 11 : i64} {
  func.func @kernel(%arg0: i32, %arg1: i32, %arg2: memref<3x8x128xf32, #tpu.memory_space<vmem>>, %arg3: memref<8x128xf32, #tpu.memory_space<vmem>>, %arg4: memref<1x128xf32, #tpu.memory_space<vmem>>, %arg5: memref<8x128xf32, #tpu.memory_space<vmem>>) attributes {dimension_semantics = [#tpu.dimension_semantics<parallel>, #tpu.dimension_semantics<arbitrary>], iteration_bounds = array<i64: 1, 1>, scalar_prefetch = 0 : i64, scratch_operands = 1 : i64, tpu.core_type = #tpu.core_type<tc>, window_params = [{transform_indices = @transform_0, window_bounds = array<i64: 3, 8, 128>}, {transform_indices = @transform_1, window_bounds = array<i64: 8, 128>}, {transform_indices = @transform_2, window_bounds = array<i64: 1, 128>}]} {
    %c0_i32 = arith.constant 0 : i32
    %0 = arith.cmpi eq, %arg1, %c0_i32 : i32
    %1 = arith.extui %0 : i1 to i32
    %c0_i32_0 = arith.constant 0 : i32
    %2 = arith.cmpi ne, %1, %c0_i32_0 : i32
    scf.if %2 {
      %cst_20 = arith.constant 0.000000e+00 : f32
      %45 = vector.broadcast %cst_20 : f32 to vector<8x128xf32>
      %c0_21 = arith.constant 0 : index
      %c0_22 = arith.constant 0 : index
      %46 = vector.load %arg5[%c0_21, %c0_22] : memref<8x128xf32, #tpu.memory_space<vmem>>, vector<8x128xf32>
      tpu.vector_store %arg5[%c0_21, %c0_22], %45 {strides = array<i32>} : memref<8x128xf32, #tpu.memory_space<vmem>>, vector<8x128xf32>,
    } else {
    }
    %c0 = arith.constant 0 : index
    %c0_1 = arith.constant 0 : index
    %3 = vector.load %arg3[%c0, %c0_1] : memref<8x128xf32, #tpu.memory_space<vmem>>, vector<8x128xf32>
    %cst = arith.constant 0.000000e+00 : f32
    %4 = vector.broadcast %cst : f32 to vector<8x128xf32>
    %c0_2 = arith.constant 0 : index
    %c0_3 = arith.constant 0 : index
    %c0_4 = arith.constant 0 : index
    %5 = vector.load %arg2[%c0_2, %c0_3, %c0_4] : memref<3x8x128xf32, #tpu.memory_space<vmem>>, vector<1x8x128xf32>
    %6 = vector.shape_cast %5 : vector<1x8x128xf32> to vector<8x128xf32>
    %7 = arith.subf %3, %6 : vector<8x128xf32>
    %cst_5 = arith.constant -0.899999976 : f32
    %8 = vector.broadcast %cst_5 : f32 to vector<8x128xf32>
    %9 = arith.mulf %8, %7 : vector<8x128xf32>
    %cst_6 = arith.constant 1.000000e-01 : f32
    %10 = vector.broadcast %cst_6 : f32 to vector<8x128xf32>
    %11 = arith.mulf %10, %7 : vector<8x128xf32>
    %12 = arith.maximumf %9, %11 : vector<8x128xf32>
    %13 = arith.addf %4, %12 : vector<8x128xf32>
    %c1 = arith.constant 1 : index
    %c0_7 = arith.constant 0 : index
    %c0_8 = arith.constant 0 : index
    %14 = vector.load %arg2[%c1, %c0_7, %c0_8] : memref<3x8x128xf32, #tpu.memory_space<vmem>>, vector<1x8x128xf32>
    %15 = vector.shape_cast %14 : vector<1x8x128xf32> to vector<8x128xf32>
    %16 = arith.subf %3, %15 : vector<8x128xf32>
    %cst_9 = arith.constant -5.000000e-01 : f32
    %17 = vector.broadcast %cst_9 : f32 to vector<8x128xf32>
    %18 = arith.mulf %17, %16 : vector<8x128xf32>
    %cst_10 = arith.constant 5.000000e-01 : f32
    %19 = vector.broadcast %cst_10 : f32 to vector<8x128xf32>
    %20 = arith.mulf %19, %16 : vector<8x128xf32>
    %21 = arith.maximumf %18, %20 : vector<8x128xf32>
    %22 = arith.addf %13, %21 : vector<8x128xf32>
    %c2 = arith.constant 2 : index
    %c0_11 = arith.constant 0 : index
    %c0_12 = arith.constant 0 : index
    %23 = vector.load %arg2[%c2, %c0_11, %c0_12] : memref<3x8x128xf32, #tpu.memory_space<vmem>>, vector<1x8x128xf32>
    %24 = vector.shape_cast %23 : vector<1x8x128xf32> to vector<8x128xf32>
    %25 = arith.subf %3, %24 : vector<8x128xf32>
    %cst_13 = arith.constant -1.000000e-01 : f32
    %26 = vector.broadcast %cst_13 : f32 to vector<8x128xf32>
    %27 = arith.mulf %26, %25 : vector<8x128xf32>
    %cst_14 = arith.constant 0.899999976 : f32
    %28 = vector.broadcast %cst_14 : f32 to vector<8x128xf32>
    %29 = arith.mulf %28, %25 : vector<8x128xf32>
    %30 = arith.maximumf %27, %29 : vector<8x128xf32>
    %31 = arith.addf %22, %30 : vector<8x128xf32>
    %c1_i32 = arith.constant 1 : i32
    %32 = arith.muli %arg0, %c1_i32 : i32
    %33 = arith.addi %32, %arg1 : i32
    %c1_i32_15 = arith.constant 1 : i32
    %34 = arith.addi %33, %c1_i32_15 : i32
    %c1024_i32 = arith.constant 1024 : i32
    %35 = arith.muli %34, %c1024_i32 : i32
    %c8_i32 = arith.constant 8 : i32
    %36 = arith.cmpi sle, %35, %c8_i32 : i32
    %37 = arith.extui %36 : i1 to i32
    %c0_i32_16 = arith.constant 0 : i32
    %38 = arith.cmpi ne, %37, %c0_i32_16 : i32
    scf.if %38 {
      %c0_20 = arith.constant 0 : index
      %c0_21 = arith.constant 0 : index
      %45 = vector.load %arg5[%c0_20, %c0_21] : memref<8x128xf32, #tpu.memory_space<vmem>>, vector<8x128xf32>
      %46 = arith.addf %45, %31 : vector<8x128xf32>
      %c0_22 = arith.constant 0 : index
      %c0_23 = arith.constant 0 : index
      %47 = vector.load %arg5[%c0_22, %c0_23] : memref<8x128xf32, #tpu.memory_space<vmem>>, vector<8x128xf32>
      tpu.vector_store %arg5[%c0_22, %c0_23], %46 {strides = array<i32>} : memref<8x128xf32, #tpu.memory_space<vmem>>, vector<8x128xf32>,
    } else {
    }
    %true = arith.constant true
    %39 = arith.xori %36, %true : i1
    %40 = arith.extui %39 : i1 to i32
    %c0_i32_17 = arith.constant 0 : i32
    %41 = arith.cmpi ne, %40, %c0_i32_17 : i32
    scf.if %41 {
      %45 = tpu.iota {dimensions = array<i32: 0>} : vector<8x128xi32>
      %46 = tpu.iota {dimensions = array<i32: 1>} : vector<8x128xi32>
      %c1024_i32_20 = arith.constant 1024 : i32
      %47 = arith.muli %33, %c1024_i32_20 : i32
      %c128_i32 = arith.constant 128 : i32
      %48 = vector.broadcast %c128_i32 : i32 to vector<8x128xi32>
      %49 = arith.muli %45, %48 : vector<8x128xi32>
      %50 = vector.broadcast %47 : i32 to vector<8x128xi32>
      %51 = arith.addi %50, %49 : vector<8x128xi32>
      %52 = arith.addi %51, %46 : vector<8x128xi32>
      %c0_21 = arith.constant 0 : index
      %c0_22 = arith.constant 0 : index
      %53 = vector.load %arg5[%c0_21, %c0_22] : memref<8x128xf32, #tpu.memory_space<vmem>>, vector<8x128xf32>
      %c8_i32_23 = arith.constant 8 : i32
      %54 = vector.broadcast %c8_i32_23 : i32 to vector<8x128xi32>
      %55 = arith.cmpi slt, %52, %54 : vector<8x128xi32>
      %cst_24 = arith.constant 0.000000e+00 : f32
      %56 = vector.broadcast %cst_24 : f32 to vector<8x128xf32>
      %57 = arith.select %55, %31, %56 : vector<8x128xi1>, vector<8x128xf32>
      %58 = arith.addf %53, %57 : vector<8x128xf32>
      %c0_25 = arith.constant 0 : index
      %c0_26 = arith.constant 0 : index
      %59 = vector.load %arg5[%c0_25, %c0_26] : memref<8x128xf32, #tpu.memory_space<vmem>>, vector<8x128xf32>
      tpu.vector_store %arg5[%c0_25, %c0_26], %58 {strides = array<i32>} : memref<8x128xf32, #tpu.memory_space<vmem>>, vector<8x128xf32>,
    } else {
    }
    %c0_i32_18 = arith.constant 0 : i32
    %42 = arith.cmpi eq, %arg1, %c0_i32_18 : i32
    %43 = arith.extui %42 : i1 to i32
    %c0_i32_19 = arith.constant 0 : i32
    %44 = arith.cmpi ne, %43, %c0_i32_19 : i32
    scf.if %44 {
      %c0_20 = arith.constant 0 : index
      %c0_21 = arith.constant 0 : index
      %45 = vector.load %arg5[%c0_20, %c0_21] : memref<8x128xf32, #tpu.memory_space<vmem>>, vector<8x128xf32>
      %cst_22 = arith.constant dense<0.000000e+00> : vector<128xf32>
      %46 = vector.multi_reduction <add>, %45, %cst_22 [0] : vector<8x128xf32> to vector<128xf32>
      %47 = vector.shape_cast %46 : vector<128xf32> to vector<1x128xf32>
      %c0_23 = arith.constant 0 : index
      %c0_24 = arith.constant 0 : index
      %48 = vector.load %arg4[%c0_23, %c0_24] : memref<1x128xf32, #tpu.memory_space<vmem>>, vector<1x128xf32>
      tpu.vector_store %arg4[%c0_23, %c0_24], %47 {strides = array<i32>} : memref<1x128xf32, #tpu.memory_space<vmem>>, vector<1x128xf32>,
    } else {
    }
    return
  }
  func.func @transform_0(%arg0: i32, %arg1: i32) -> (i32, i32, i32) {
    %c1_i32 = arith.constant 1 : i32
    %0 = arith.muli %arg0, %c1_i32 : i32
    %1 = arith.addi %0, %arg1 : i32
    %c0_i32 = arith.constant 0 : i32
    %2 = arith.minsi %1, %c0_i32 : i32
    %c0_i32_0 = arith.constant 0 : i32
    %c0_i32_1 = arith.constant 0 : i32
    %c0_i32_2 = arith.constant 0 : i32
    return %c0_i32_0, %2, %c0_i32_1 : i32, i32, i32
  }
  func.func @transform_1(%arg0: i32, %arg1: i32) -> (i32, i32) {
    %c1_i32 = arith.constant 1 : i32
    %0 = arith.muli %arg0, %c1_i32 : i32
    %1 = arith.addi %0, %arg1 : i32
    %c0_i32 = arith.constant 0 : i32
    %2 = arith.minsi %1, %c0_i32 : i32
    %c0_i32_0 = arith.constant 0 : i32
    %c0_i32_1 = arith.constant 0 : i32
    return %2, %c0_i32_0 : i32, i32
  }
  func.func @transform_2(%arg0: i32, %arg1: i32) -> (i32, i32) {
    %c0_i32 = arith.constant 0 : i32
    %c0_i32_0 = arith.constant 0 : i32
    return %arg0, %c0_i32 : i32, i32
  }
}

</mosaic_0001>

<llo_original>
// kernel: tpu_custom_call.1
$region0: #{tpu_custom_call.1}
  #allocation0 [shape = 'u32[]', space=smem, size = 0x4, offset = 0x4, fixed_abs, tag = 'smem constant byte address 0x4 - core index']
  #allocation1 [shape = 'u32[144,128]{1,0:T(1,128)}', space=vmem, size = 0x12000, scoped, tag = 'internal scratch']
  #allocation2 [shape = 'f32[8,128]{1,0:T(8,128)}', space=vmem, size = 0x1000, scoped, tag = 'scratch operand']
  %s0 = inlined_call_operand.hbm [shape: f32[3,8,128], index: 0, kind: input, shape index: {}]
  %s1 = inlined_call_operand.hbm [shape: f32[8,128], index: 1, kind: input, shape index: {}]
  %s2 = inlined_call_operand.hbm [shape: f32[1,128], index: 2, kind: output, shape index: {}]
  %s3 = sld [smem:[#allocation0]]
  $region42: #{tpu_custom_call.1} parent=0
    _
  %s5 = ssub.s32 1, %s3
  %s6 = scalar_select 0, %s5, %s3
  $region1: #{tpu_custom_call.1} parent=0
    #allocation3 [shape = 'u8[12288]{0}', space=vmem, size = 0x3000, scoped, tag = 'input window, operand 0, single buffered']
    #allocation4 [shape = 's32[1]{0}', space=sflag, size = 0x4, scoped, tag = 'scoped memory for tpu_custom_call.1']
    #allocation5 [shape = 's32[1]{0}', space=sflag, size = 0x4, scoped, tag = 'scoped memory for tpu_custom_call.1']
    #allocation6 [shape = 'u8[4096]{0}', space=vmem, size = 0x1000, scoped, tag = 'input window, operand 1, single buffered']
    #allocation7 [shape = 's32[1]{0}', space=sflag, size = 0x4, scoped, tag = 'scoped memory for tpu_custom_call.1']
    #allocation8 [shape = 'u8[512]{0}', space=vmem, size = 0x400, scoped, tag = 'output window, operand 0, single buffered']
    %7 = vsyncpa [#allocation4], 0
    %8 = vsyncpa [#allocation7], 0
    %9 = vsyncpa [#allocation5], 0
    // Predicated region
    $region2: #{tpu_custom_call.1} parent=1 // pred_check
      _
    $region3: #{tpu_custom_call.1} parent=1 // pred_check_branch
      %11 = sbr.rel (0) target = $region5
    $region4: #{tpu_custom_call.1} parent=1 // pred_region
      %s12 = sadd.s32 0, 0
      %p13 = scmp.lt.s32.totalorder %s12, 0
      %s14 = scalar_select %p13, %s12, 0
      %s16 = ssub.s32 384, 384
      %17 = vsyncadd [#allocation4], %s16
      %s18 = smul.addr %s14, 128
      %s19 = scalar_lea.hbm %s0, %s18
      %s20 = sshll.u32 [#allocation3], 4
      %s21 = int_to_ptr.vmem [resolvable:$true] %s20
      %26 = dma.hbm_to_vmem [thread:$0]  %s19, 384, %s21, [#allocation4], 128, 128, 8
    $region5: #{tpu_custom_call.1} parent=1 // pred_fallthru
      _
    // Predicated region
    $region6: #{tpu_custom_call.1} parent=1 // pred_check
      _
    $region7: #{tpu_custom_call.1} parent=1 // pred_check_branch
      %28 = sbr.rel (0) target = $region9
    $region8: #{tpu_custom_call.1} parent=1 // pred_region
      %s29 = sadd.s32 0, 0
      %p30 = scmp.lt.s32.totalorder %s29, 0
      %s31 = scalar_select %p30, %s29, 0
      %s33 = ssub.s32 128, 128
      %34 = vsyncadd [#allocation7], %s33
      %s35 = smul.addr %s31, 128
      %s36 = scalar_lea.hbm %s1, %s35
      %s38 = sshll.u32 [#allocation6], 4
      %s39 = int_to_ptr.vmem [resolvable:$true] %s38
      %41 = dma.hbm_to_vmem [thread:$0]  %s36, 128, %s39, [#allocation7]
    $region9: #{tpu_custom_call.1} parent=1 // pred_fallthru
      _
    // Predicated region
    $region10: #{tpu_custom_call.1} parent=1 // pred_check
      _
    $region11: #{tpu_custom_call.1} parent=1 // pred_check_branch
      %43 = sbr.rel (0) target = $region13
    $region12: #{tpu_custom_call.1} parent=1 // pred_region
      %44 = dma.done [#allocation4], 384
    $region13: #{tpu_custom_call.1} parent=1 // pred_fallthru
      _
    // Predicated region
    $region14: #{tpu_custom_call.1} parent=1 // pred_check
      _
    $region15: #{tpu_custom_call.1} parent=1 // pred_check_branch
      %46 = sbr.rel (0) target = $region17
    $region16: #{tpu_custom_call.1} parent=1 // pred_region
      %47 = dma.done [#allocation7], 128
    $region17: #{tpu_custom_call.1} parent=1 // pred_fallthru
      _
    %s48 = sadd.s32 0, 0
    %p49 = scmp.lt.s32.totalorder %s48, 0
    %s50 = scalar_select %p49, %s48, 0
    %s51 = sadd.s32 0, 0
    %p52 = scmp.lt.s32.totalorder %s51, 0
    %s53 = scalar_select %p52, %s51, 0
    %p54 = scmp.eq.s32.totalorder 0, 0
    // Predicated region
    $region18: #{tpu_custom_call.1} parent=1 // pred_check
      %p55 = pneg %p54
    $region19: #{tpu_custom_call.1} parent=1 // pred_check_branch
      %57 = sbr.rel (%p55) target = $region21
    $region20: #{tpu_custom_call.1} parent=1 // pred_region
      %58 = vst [vmem:[#allocation2] sm:$0xff] 0.0
    $region21: #{tpu_custom_call.1} parent=1 // pred_fallthru
      _
    %v59 = vld [vmem:[#allocation6] sm:$0xff]
    %v60 = vld [vmem:[#allocation3] sm:$0xff]
    %v61 = vsub.f32 %v59, %v60
    %v62 = vmul.f32 %v61, -0.9
    %v63 = vmul.f32 %v61, 0.1
    %v64 = vmax.f32 %v62, %v63
    %v65 = vadd.f32 %v64, 0.0
    %s66 = scalar_lea.vmem [#allocation3], 8
    %v67 = vld [vmem:[%s66] sm:$0xff]
    %v68 = vsub.f32 %v59, %v67
    %v69 = vmul.f32 %v68, -0.5
    %v70 = vmul.f32 %v68, 0.5
    %v71 = vmax.f32 %v69, %v70
    %v72 = vadd.f32 %v65, %v71
    %s73 = scalar_lea.vmem [#allocation3], 16
    %v74 = vld [vmem:[%s73] sm:$0xff]
    %v75 = vsub.f32 %v59, %v74
    %v76 = vmul.f32 %v75, -0.1
    %v77 = vmul.f32 %v75, 0.9
    %v78 = vmax.f32 %v76, %v77
    %v79 = vadd.f32 %v72, %v78
    %s80 = sadd.s32 0, 0
    %s81 = sadd.s32 %s80, 1
    %s82 = smul.u32 %s81, 1024
    %p83 = scmp.le.s32.totalorder %s82, 8
    // Predicated region
    $region22: #{tpu_custom_call.1} parent=1 // pred_check
      %p84 = pneg %p83
    $region23: #{tpu_custom_call.1} parent=1 // pred_check_branch
      %86 = sbr.rel (%p84) target = $region25
    $region24: #{tpu_custom_call.1} parent=1 // pred_region
      %v87 = vld [vmem:[#allocation2] sm:$0xff]
      %v88 = vadd.f32 %v87, %v79
      %89 = vst [vmem:[#allocation2] sm:$0xff] %v88
    $region25: #{tpu_custom_call.1} parent=1 // pred_fallthru
      _
    %p90 = scmp.gt.s32.totalorder %s82, 8
    // Predicated region
    $region26: #{tpu_custom_call.1} parent=1 // pred_check
      %p91 = pneg %p90
    $region27: #{tpu_custom_call.1} parent=1 // pred_check_branch
      %93 = sbr.rel (%p91) target = $region29
    $region28: #{tpu_custom_call.1} parent=1 // pred_region
      %v94 = vlaneseq
      %v95 = vshrl.u32 %v94, 7
      %v96 = vlaneseq
      %v97 = vand.u32 %v96, 127
      %s98 = smul.u32 %s80, 1024
      %v99 = vmul.u32 %v95, 128
      %v100 = vstv %s98
      %v101 = vadd.s32 %v100, %v99
      %v102 = vadd.s32 %v101, %v97
      %v103 = vld [vmem:[#allocation2] sm:$0xff]
      %vm104 = vcmp.lt.s32.totalorder %v102, 8
      %v105 = vsel %vm104, %v79, 0.0
      %v106 = vadd.f32 %v103, %v105
      %107 = vst [vmem:[#allocation2] sm:$0xff] %v106
    $region29: #{tpu_custom_call.1} parent=1 // pred_fallthru
      _
    // Predicated region
    $region30: #{tpu_custom_call.1} parent=1 // pred_check
      %p108 = pneg %p54
    $region31: #{tpu_custom_call.1} parent=1 // pred_check_branch
      %110 = sbr.rel (%p108) target = $region33
    $region32: #{tpu_custom_call.1} parent=1 // pred_region
      %v111 = vld [vmem:[#allocation2] sm:$0xff]
      %v112 = vrot.slane %v111, 4
      %v113 = vadd.f32 %v111, %v112
      %v114 = vrot.slane %v113, 2
      %v115 = vadd.f32 %v113, %v114
      %v116 = vrot.slane %v115, 1
      %v117 = vadd.f32 %v115, %v116
      %118 = vst [vmem:[#allocation8] sm:$0x1] %v117
    $region33: #{tpu_custom_call.1} parent=1 // pred_fallthru
      _
    // Predicated region
    $region34: #{tpu_custom_call.1} parent=1 // pred_check
      _
    $region35: #{tpu_custom_call.1} parent=1 // pred_check_branch
      %120 = sbr.rel (0) target = $region37
    $region36: #{tpu_custom_call.1} parent=1 // pred_region
      %s122 = ssub.s32 16, 16
      %123 = vsyncadd [#allocation5], %s122
      %s125 = sshll.u32 [#allocation8], 4
      %s126 = int_to_ptr.vmem [resolvable:$true] %s125
      %128 = dma.vmem_to_hbm [thread:$0]  %s126, 16, %s2, [#allocation5]
    $region37: #{tpu_custom_call.1} parent=1 // pred_fallthru
      _
    // Predicated region
    $region38: #{tpu_custom_call.1} parent=1 // pred_check
      _
    $region39: #{tpu_custom_call.1} parent=1 // pred_check_branch
      %130 = sbr.rel (0) target = $region41
    $region40: #{tpu_custom_call.1} parent=1 // pred_region
      %131 = dma.done [#allocation5], 16
    $region41: #{tpu_custom_call.1} parent=1 // pred_fallthru
      _
    %132 = vsyncpa [#allocation4], 1
    %133 = vsyncpa [#allocation7], 1
    %134 = vsyncpa [#allocation5], 1

</llo_original>
